<compile_context>
chip_gen: v5e
topology: v5e:2x2
jax: 0.10.0
libtpu: 0.0.40
codegen_flags: <defaults>
</compile_context>

<pallas_src>
import functools

import jax
import jax.numpy as jnp
from jax.experimental import pallas as pl
from jax.experimental.pallas import tpu as pltpu


def _ceil_to(x, m):
    return ((x + m - 1) // m) * m


def _vmem_budget_bytes():
    """~75% of physical VMEM: ~48 MiB on v7x (64 MiB/TC), ~96 MiB on v5e/v6e."""
    try:
        cap = int(pltpu.get_tpu_info().vmem_capacity_bytes)
    except Exception:
        cap = 64 << 20
    return cap * 3 // 4


def _padded_io(in_size, out_size, tn_max):
    inp = _ceil_to(in_size, 128)
    outp = _ceil_to(out_size, 128)
    if outp > tn_max:
        outp = _ceil_to(outp, tn_max)
    return inp, outp


def _tiling(batch, in_size, out_size, tb_max, tn_max):
    inp, outp = _padded_io(in_size, out_size, tn_max)
    tn = outp if outp <= tn_max else tn_max
    # Minimal-waste batch tile: avoid Bp ~ 2*B pathologies (e.g. B=300 -> 512).
    n_bt = pl.cdiv(batch, tb_max)
    tb = _ceil_to(pl.cdiv(batch, n_bt), 8)
    bp = _ceil_to(batch, tb)
    # Give v7x's 2 TensorCores >= 2 "parallel" programs when tiles allow it.
    if (outp // tn) * (bp // tb) == 1 and tn % 256 == 0:
        tn //= 2
    return bp, tb, inp, outp, tn


# -----------------------------------------------------------------------------
# Kernel: fused T-step LIF rollout for one (batch-tile, output-tile) block.
# -----------------------------------------------------------------------------
def lif_rollout_kernel(x_ref, w_ref, p_ref, v0_ref, spikes_ref, v_out_ref, v_acc):
    # x:(1,TB,Inp) bf16   w:(Inp,TN) bf16   p:(8,TN) f32 (rows: bias/decay/thr)
    # v0:(TB,TN) f32      spikes:(1,TB,TN) bf16   v_out:(TB,TN) f32
    # v_acc:(TB,TN) f32 VMEM scratch (membrane state of this tile)
    t = pl.program_id(2)

    @pl.when(t == 0)
    def _():
        v_acc[...] = v0_ref[...]

    z = jnp.dot(x_ref[0], w_ref[...], preferred_element_type=jnp.float32)

    bias = p_ref[0:1, :]
    decay = p_ref[1:2, :]
    thr = p_ref[2:3, :]

    v_new = v_acc[...] * decay + z + bias
    spikes = jax.nn.sigmoid(5.0 * (v_new - thr))        # exp lands on the EUP slot
    spikes_ref[0] = spikes.astype(spikes_ref.dtype)     # bf16 store: half vst/HBM
    v_acc[...] = v_new * (1.0 - spikes)

    @pl.when(t == pl.num_programs(2) - 1)
    def _():
        v_out_ref[...] = v_acc[...]


# -----------------------------------------------------------------------------
# One-time operand packing (hoisted out of the per-call path).
# -----------------------------------------------------------------------------
def pack_layer(weight, bias, decay, threshold, *, tn_max=512):
    """weight is (Out, In) like nn.Linear.  Returns (w_packed, params_slab)."""
    out_size, in_size = weight.shape
    inp, outp = _padded_io(in_size, out_size, tn_max)
    w_p = jnp.zeros((inp, outp), jnp.bfloat16).at[:in_size, :out_size].set(
        jnp.asarray(weight, jnp.float32).T.astype(jnp.bfloat16))
    params = jnp.zeros((8, outp), jnp.float32)
    params = params.at[0, :out_size].set(jnp.asarray(bias, jnp.float32))
    params = params.at[1, :out_size].set(jnp.asarray(decay, jnp.float32))
    params = params.at[2, :out_size].set(jnp.asarray(threshold, jnp.float32))
    return w_p, params


# -----------------------------------------------------------------------------
# Fused T-step rollout wrapper (jit'ed; only x is padded per call).
# -----------------------------------------------------------------------------
@functools.partial(jax.jit, static_argnames=("out_size", "tb_max", "tn_max"))
def lif_rollout(x_seq, w_p, params, v_p=None, *, out_size, tb_max=256, tn_max=512):
    """x_seq: (T, B, In).  Returns (spikes (T,B,Out) bf16, padded state (Bp,OutP) f32)."""
    T, B, In = x_seq.shape
    Bp, TB, Inp, OutP, TN = _tiling(B, In, out_size, tb_max, tn_max)
    assert w_p.shape == (Inp, OutP) and params.shape == (8, OutP), (
        "packed operands do not match this (input_size, output_size, tn_max)")

    if v_p is None or v_p.shape != (Bp, OutP):
        v_p = jnp.zeros((Bp, OutP), jnp.float32)   # PyTorch reset_state()

    # Only the streaming input is padded per call; W/params/v stay packed.
    x_p = jnp.zeros((T, Bp, Inp), jnp.bfloat16).at[:, :B, :In].set(
        x_seq.astype(jnp.bfloat16))

    grid = (OutP // TN, Bp // TB, T)   # W stationary; batch inner; time innermost

    # Double-buffered per-tile working set, capped to ~75% of physical VMEM.
    tile_bytes = 2 * (TB * Inp * 2 + Inp * TN * 2 + 8 * TN * 4 + TB * TN * 4
                      + TB * TN * 2 + TB * TN * 4) + TB * TN * 4
    vmem_limit = int(min(_vmem_budget_bytes(), max(2 * tile_bytes, 32 << 20)))

    spikes_p, v_out_p = pl.pallas_call(
        lif_rollout_kernel,
        out_shape=(
            jax.ShapeDtypeStruct((T, Bp, OutP), jnp.bfloat16),   # spikes
            jax.ShapeDtypeStruct((Bp, OutP), jnp.float32),       # final membrane
        ),
        grid=grid,
        in_specs=[
            pl.BlockSpec((1, TB, Inp), lambda j, i, t: (t, i, 0)),   # x_t
            pl.BlockSpec((Inp, TN), lambda j, i, t: (0, j)),         # W^T (stationary)
            pl.BlockSpec((8, TN), lambda j, i, t: (0, j)),           # params slab
            pl.BlockSpec((TB, TN), lambda j, i, t: (i, j)),          # v0
        ],
        out_specs=(
            pl.BlockSpec((1, TB, TN), lambda j, i, t: (t, i, j)),    # spikes_t
            pl.BlockSpec((TB, TN), lambda j, i, t: (i, j)),          # final v
        ),
        scratch_shapes=[pltpu.VMEM((TB, TN), jnp.float32)],          # membrane acc
        input_output_aliases={3: 1},                                 # v0 -> final v
        compiler_params=pltpu.CompilerParams(
            dimension_semantics=("parallel", "parallel", "arbitrary"),
            vmem_limit_bytes=vmem_limit),
    )(x_p, w_p, params, v_p)

    # Padded cols/rows carry sigmoid(0)=0.5 garbage; sliced away here.
    return spikes_p[:, :B, :out_size], v_out_p


def lif_step(x, w_p, params, v_p=None, *, out_size, tb_max=256, tn_max=512):
    """Single forward step (the PyTorch module's forward). Returns (spikes, state)."""
    spikes_seq, v_p_new = lif_rollout(x[None], w_p, params, v_p,
                                      out_size=out_size, tb_max=tb_max,
                                      tn_max=tn_max)
    return spikes_seq[0], v_p_new


def init_params(key, input_size, output_size):
    """Deterministic init matching the PyTorch module's __init__."""
    kw, kb, kthr, kdec = jax.random.split(key, 4)
    bound = 1.0 / jnp.sqrt(jnp.float32(input_size))     # nn.Linear default init
    weight = jax.random.uniform(kw, (output_size, input_size),
                                jnp.float32, -bound, bound)
    bias = jax.random.uniform(kb, (output_size,), jnp.float32, -bound, bound)
    threshold = jax.random.uniform(kthr, (output_size,), jnp.float32) * 1.0
    decay = jax.random.uniform(kdec, (output_size,), jnp.float32) * 0.5 + 0.4
    return weight, bias, threshold, decay


if __name__ == "__main__":
    batch, input_size, output_size, T = 8, 32, 32, 4

    key = jax.random.PRNGKey(0)
    kx, kparams = jax.random.split(key)
    x_seq = jax.random.normal(kx, (T, batch, input_size), jnp.float32)
    weight, bias, threshold, decay = init_params(kparams, input_size, output_size)

    # Pack W / bias / decay / threshold ONCE (hoisted out of the call path).
    w_p, params = pack_layer(weight, bias, decay, threshold)

    # (a) Fused T-step rollout: one pallas_call, weights resident across steps.
    spikes_seq, v_final = lif_rollout(x_seq, w_p, params, None,
                                      out_size=output_size)

    # (b) Step-by-step recurrent use (matches the PyTorch module call pattern);
    #     the padded state is threaded between calls without slice/re-pad.
    v_state = None
    step_spikes = []
    for t in range(T):
        s_t, v_state = lif_step(x_seq[t], w_p, params, v_state,
                                out_size=output_size)
        step_spikes.append(s_t)

    jax.block_until_ready((spikes_seq, v_final, v_state))

    # Pure-JAX f32 reference (PyTorch semantics); kernel uses bf16 matmul/stores,
    # hence the loose tolerance (documented tradeoff).
    def ref_step(x_in, v_in):
        v_new = v_in * decay + (x_in @ weight.T + bias)
        s = jax.nn.sigmoid(5.0 * (v_new - threshold))
        return s, v_new * (1.0 - s)

    v_ref = jnp.zeros((batch, output_size), jnp.float32)
    for t in range(T):
        s_ref, v_ref = ref_step(x_seq[t], v_ref)
        assert jnp.allclose(spikes_seq[t].astype(jnp.float32), s_ref,
                            atol=3e-2, rtol=3e-2), f"fused spikes mismatch @t={t}"
        assert jnp.allclose(step_spikes[t].astype(jnp.float32), s_ref,
                            atol=3e-2, rtol=3e-2), f"stepwise spikes mismatch @t={t}"

    assert jnp.allclose(v_final[:batch, :output_size], v_ref, atol=3e-2, rtol=3e-2)
    assert jnp.allclose(v_state[:batch, :output_size], v_ref, atol=3e-2, rtol=3e-2)

    print("KERNEL_OK")
</pallas_src>

<mosaic_0001>
module attributes {stable_mosaic.version = 11 : i64} {
  func.func @lif_rollout_kernel(%arg0: i32, %arg1: i32, %arg2: i32, %arg3: memref<1x8x128xbf16, #tpu.memory_space<vmem>>, %arg4: memref<128x128xbf16, #tpu.memory_space<vmem>>, %arg5: memref<8x128xf32, #tpu.memory_space<vmem>>, %arg6: memref<8x128xf32, #tpu.memory_space<vmem>>, %arg7: memref<1x8x128xbf16, #tpu.memory_space<vmem>>, %arg8: memref<8x128xf32, #tpu.memory_space<vmem>>, %arg9: memref<8x128xf32, #tpu.memory_space<vmem>>) attributes {dimension_semantics = [#tpu.dimension_semantics<parallel>, #tpu.dimension_semantics<parallel>, #tpu.dimension_semantics<arbitrary>], iteration_bounds = array<i64: 1, 1, 4>, scalar_prefetch = 0 : i64, scratch_operands = 1 : i64, tpu.core_type = #tpu.core_type<tc>, window_params = [{transform_indices = @transform_0, window_bounds = array<i64: 1, 8, 128>}, {transform_indices = @transform_1, window_bounds = array<i64: 128, 128>}, {transform_indices = @transform_2, window_bounds = array<i64: 8, 128>}, {transform_indices = @transform_3, window_bounds = array<i64: 8, 128>}, {transform_indices = @transform_4, window_bounds = array<i64: 1, 8, 128>}, {transform_indices = @transform_5, window_bounds = array<i64: 8, 128>}]} {
    %c0_i32 = arith.constant 0 : i32
    %0 = arith.cmpi eq, %arg2, %c0_i32 : i32
    %1 = arith.extui %0 : i1 to i32
    %c0_i32_0 = arith.constant 0 : i32
    %2 = arith.cmpi ne, %1, %c0_i32_0 : i32
    scf.if %2 {
      %c0_20 = arith.constant 0 : index
      %c0_21 = arith.constant 0 : index
      %36 = vector.load %arg6[%c0_20, %c0_21] : memref<8x128xf32, #tpu.memory_space<vmem>>, vector<8x128xf32>
      %c0_22 = arith.constant 0 : index
      %c0_23 = arith.constant 0 : index
      %37 = vector.load %arg9[%c0_22, %c0_23] : memref<8x128xf32, #tpu.memory_space<vmem>>, vector<8x128xf32>
      tpu.vector_store %arg9[%c0_22, %c0_23], %36 {strides = array<i32>} : memref<8x128xf32, #tpu.memory_space<vmem>>, vector<8x128xf32>,
    } else {
    }
    %c0 = arith.constant 0 : index
    %c0_1 = arith.constant 0 : index
    %c0_2 = arith.constant 0 : index
    %3 = vector.load %arg3[%c0, %c0_1, %c0_2] : memref<1x8x128xbf16, #tpu.memory_space<vmem>>, vector<1x8x128xbf16>
    %4 = vector.shape_cast %3 : vector<1x8x128xbf16> to vector<8x128xbf16>
    %c0_3 = arith.constant 0 : index
    %c0_4 = arith.constant 0 : index
    %5 = vector.load %arg4[%c0_3, %c0_4] : memref<128x128xbf16, #tpu.memory_space<vmem>>, vector<128x128xbf16>
    %cst = arith.constant dense<0.000000e+00> : vector<8x128xf32>
    %6 = tpu.matmul %4, %5, %cst {dimension_numbers = #tpu.dot_dimension_numbers<[1], [0], [0], [1], [0, 0, 1, 1], [], []>} : vector<8x128xbf16>, vector<128x128xbf16>, vector<8x128xf32> -> vector<8x128xf32>
    %c0_5 = arith.constant 0 : index
    %c0_6 = arith.constant 0 : index
    %7 = vector.load %arg5[%c0_5, %c0_6] : memref<8x128xf32, #tpu.memory_space<vmem>>, vector<1x128xf32>
    %c1 = arith.constant 1 : index
    %c0_7 = arith.constant 0 : index
    %8 = vector.load %arg5[%c1, %c0_7] : memref<8x128xf32, #tpu.memory_space<vmem>>, vector<1x128xf32>
    %c2 = arith.constant 2 : index
    %c0_8 = arith.constant 0 : index
    %9 = vector.load %arg5[%c2, %c0_8] : memref<8x128xf32, #tpu.memory_space<vmem>>, vector<1x128xf32>
    %c0_9 = arith.constant 0 : index
    %c0_10 = arith.constant 0 : index
    %10 = vector.load %arg9[%c0_9, %c0_10] : memref<8x128xf32, #tpu.memory_space<vmem>>, vector<8x128xf32>
    %11 = vector.broadcast %8 : vector<1x128xf32> to vector<8x128xf32>
    %12 = arith.mulf %10, %11 : vector<8x128xf32>
    %13 = arith.addf %12, %6 : vector<8x128xf32>
    %14 = vector.broadcast %7 : vector<1x128xf32> to vector<8x128xf32>
    %15 = arith.addf %13, %14 : vector<8x128xf32>
    %16 = vector.broadcast %9 : vector<1x128xf32> to vector<8x128xf32>
    %17 = arith.subf %15, %16 : vector<8x128xf32>
    %cst_11 = arith.constant 5.000000e+00 : f32
    %18 = vector.broadcast %cst_11 : f32 to vector<8x128xf32>
    %19 = arith.mulf %18, %17 : vector<8x128xf32>
    %20 = arith.negf %19 : vector<8x128xf32>
    %21 = math.exp %20 : vector<8x128xf32>
    %cst_12 = arith.constant 1.000000e+00 : f32
    %22 = vector.broadcast %cst_12 : f32 to vector<8x128xf32>
    %23 = arith.addf %22, %21 : vector<8x128xf32>
    %24 = arith.divf %22, %23 : vector<8x128xf32>
    %25 = arith.truncf %24 : vector<8x128xf32> to vector<8x128xbf16>
    %c0_13 = arith.constant 0 : index
    %c0_14 = arith.constant 0 : index
    %c0_15 = arith.constant 0 : index
    %26 = vector.load %arg7[%c0_13, %c0_14, %c0_15] : memref<1x8x128xbf16, #tpu.memory_space<vmem>>, vector<1x8x128xbf16>
    %27 = vector.shape_cast %26 : vector<1x8x128xbf16> to vector<8x128xbf16>
    %28 = vector.shape_cast %25 : vector<8x128xbf16> to vector<1x8x128xbf16>
    tpu.vector_store %arg7[%c0_13, %c0_14, %c0_15], %28 {strides = array<i32>} : memref<1x8x128xbf16, #tpu.memory_space<vmem>>, vector<1x8x128xbf16>,
    %cst_16 = arith.constant 1.000000e+00 : f32
    %29 = vector.broadcast %cst_16 : f32 to vector<8x128xf32>
    %30 = arith.subf %29, %24 : vector<8x128xf32>
    %31 = arith.mulf %15, %30 : vector<8x128xf32>
    %c0_17 = arith.constant 0 : index
    %c0_18 = arith.constant 0 : index
    %32 = vector.load %arg9[%c0_17, %c0_18] : memref<8x128xf32, #tpu.memory_space<vmem>>, vector<8x128xf32>
    tpu.vector_store %arg9[%c0_17, %c0_18], %31 {strides = array<i32>} : memref<8x128xf32, #tpu.memory_space<vmem>>, vector<8x128xf32>,
    %c3_i32 = arith.constant 3 : i32
    %33 = arith.cmpi eq, %arg2, %c3_i32 : i32
    %34 = arith.extui %33 : i1 to i32
    %c0_i32_19 = arith.constant 0 : i32
    %35 = arith.cmpi ne, %34, %c0_i32_19 : i32
    scf.if %35 {
      %c0_20 = arith.constant 0 : index
      %c0_21 = arith.constant 0 : index
      %36 = vector.load %arg9[%c0_20, %c0_21] : memref<8x128xf32, #tpu.memory_space<vmem>>, vector<8x128xf32>
      %c0_22 = arith.constant 0 : index
      %c0_23 = arith.constant 0 : index
      %37 = vector.load %arg8[%c0_22, %c0_23] : memref<8x128xf32, #tpu.memory_space<vmem>>, vector<8x128xf32>
      tpu.vector_store %arg8[%c0_22, %c0_23], %36 {strides = array<i32>} : memref<8x128xf32, #tpu.memory_space<vmem>>, vector<8x128xf32>,
    } else {
    }
    return
  }
  func.func @transform_0(%arg0: i32, %arg1: i32, %arg2: i32) -> (i32, i32, i32) {
    %c0_i32 = arith.constant 0 : i32
    %c0_i32_0 = arith.constant 0 : i32
    return %arg2, %arg1, %c0_i32 : i32, i32, i32
  }
  func.func @transform_1(%arg0: i32, %arg1: i32, %arg2: i32) -> (i32, i32) {
    %c0_i32 = arith.constant 0 : i32
    %c0_i32_0 = arith.constant 0 : i32
    return %c0_i32, %arg0 : i32, i32
  }
  func.func @transform_2(%arg0: i32, %arg1: i32, %arg2: i32) -> (i32, i32) {
    %c0_i32 = arith.constant 0 : i32
    %c0_i32_0 = arith.constant 0 : i32
    return %c0_i32, %arg0 : i32, i32
  }
  func.func @transform_3(%arg0: i32, %arg1: i32, %arg2: i32) -> (i32, i32) {
    %c0_i32 = arith.constant 0 : i32
    return %arg1, %arg0 : i32, i32
  }
  func.func @transform_4(%arg0: i32, %arg1: i32, %arg2: i32) -> (i32, i32, i32) {
    %c0_i32 = arith.constant 0 : i32
    return %arg2, %arg1, %arg0 : i32, i32, i32
  }
  func.func @transform_5(%arg0: i32, %arg1: i32, %arg2: i32) -> (i32, i32) {
    %c0_i32 = arith.constant 0 : i32
    return %arg1, %arg0 : i32, i32
  }
}

</mosaic_0001>

<llo_original>
// kernel: lif_rollout.1
$region0: #{lif_rollout.1}
  #allocation0 [shape = 'u32[]', space=smem, size = 0x4, offset = 0x4, fixed_abs, tag = 'smem constant byte address 0x4 - core index']
  #allocation1 [shape = 'u32[72,128]{1,0:T(1,128)}', space=vmem, size = 0x9000, scoped, tag = 'internal scratch']
  #allocation2 [shape = 'f32[8,128]{1,0:T(8,128)}', space=vmem, size = 0x1000, scoped, tag = 'scratch operand']
  %s0 = inlined_call_operand.vmem [shape: bf16[4,8,128], index: 0, kind: input, shape index: {}]
  %s1 = inlined_call_operand.vmem [shape: bf16[128,128], index: 1, kind: input, shape index: {}]
  %s2 = inlined_call_operand.vmem [shape: f32[8,128], index: 2, kind: input, shape index: {}]
  %s3 = inlined_call_operand.vmem [shape: f32[8,128], index: 3, kind: input, shape index: {}, may-alias: {3,5}]
  %s4 = inlined_call_operand.hbm [shape: bf16[4,8,128], index: 4, kind: output, shape index: {0}]
  %s5 = inlined_call_operand.vmem [shape: f32[8,128], index: 5, kind: output, shape index: {1}, may-alias: {3,5}]
  %6 = xla_tuple %s4, %s5
  %s7 = sld [smem:[#allocation0]]
  $region65: #{lif_rollout.1} parent=0
    _
  %s9 = ssub.s32 1, %s7
  %s10 = scalar_select 0, %s9, %s7
  $region1: #{lif_rollout.1} parent=0
    #allocation3 [shape = 'u8[4096]{0}', space=vmem, size = 0x1000, scoped, tag = 'output window, operand 0']
    #allocation4 [shape = 's32[2]{0}', space=sflag, size = 0x8, scoped, tag = 'scoped memory for lif_rollout.1']
    %11 = vsyncpa [#allocation4], 0
    %s12 = scalar_lea.sflag [#allocation4], 1
    %13 = vsyncpa %s12, 0
    loop: start=0, step=1, limit=6
    $region2: #{lif_rollout.1} parent=1 // loop_pre_header
      _
    $region3: #{lif_rollout.1} parent=1 // loop_header
      %s15 = sphi 0, %s19
      %p16 = scmp.ge.s32.totalorder %s15, 6
      %s22 = sphi 0, %s41
      %s23 = sphi 0, %s37
      %s24 = sphi 0, %s33
      %s25 = sphi 0, %s22
      %s26 = sphi 0, %s23
      %s27 = sphi 0, %s24
      %s28 = sphi 0, %s25
      %s29 = sphi 0, %s26
      %s30 = sphi 0, %s27
      %s46 = sphi 0, %s48
      %s49 = sphi 0, %s46
      %s50 = sphi 0, %s49
      %s66 = sphi 0, %s50
      %s72 = sphi 0, %s74
      %s75 = sphi 0, %s72
      %s76 = sphi 0, %s75
      %s92 = sphi 0, %s76
      %s98 = sphi 0, %s100
      %s101 = sphi 0, %s98
      %s102 = sphi 0, %s101
      %s118 = sphi 0, %s102
      %s126 = sphi 0, %s128
      %s129 = sphi 0, %s126
      %s130 = sphi 0, %s129
      %s146 = sphi 0, %s130
      %s156 = sphi 0, %s158
      %s159 = sphi 0, %s156
      %s160 = sphi 0, %s159
      %s176 = sphi 0, %s160
      %s184 = sphi 0, %s186
      %s187 = sphi 0, %s184
      %s188 = sphi 0, %s187
      %s204 = sphi 0, %s188
    $region4: #{lif_rollout.1} parent=1 // loop_header_branch
      %18 = sbr.rel (%p16) target = $region8
    $region5: #{lif_rollout.1} parent=1 // loop_body
      %s20 = ssub.s32 %s15, 1
      %s21 = ssub.s32 %s15, 2
      %s31 = sadd.s32 1, %s24
      %p32 = scmp.ge.s32.totalorder %s31, 4
      %s33 = scalar_select %p32, 0, %s31
      %s34 = sadd.s32 1, %s23
      %s35 = scalar_select %p32, %s34, %s23
      %p36 = scmp.ge.s32.totalorder %s35, 1
      %s37 = scalar_select %p36, 0, %s35
      %s38 = sadd.s32 1, %s22
      %s39 = scalar_select %p36, %s38, %s22
      %p40 = scmp.ge.s32.totalorder %s39, 1
      %s41 = scalar_select %p40, 0, %s39
      %s42 = ssub.s32 %s24, %s33
      %s43 = ssub.s32 %s23, %s37
      %s44 = sor.u32 %s42, %s43
      %p45 = scmp.eq.s32.totalorder %s44, 0
      %s47 = sadd.s32 %s46, 1
      %s48 = scalar_select %p45, %s46, %s47
      %p51 = pneg %p45
      %p52 = scmp.eq.s32.totalorder %s15, 3
      %p53 = por %p51, %p52
      %p54 = scmp.ne.s32.totalorder %s46, %s49
      %p55 = scmp.eq.s32.totalorder %s15, 0
      %p56 = por %p54, %p55
      %p57 = scmp.ne.s32.totalorder %s46, %s49
      %p58 = scmp.eq.s32.totalorder %s20, 3
      %p59 = por %p57, %p58
      %p60 = scmp.ne.s32.totalorder %s49, %s50
      %p61 = scmp.eq.s32.totalorder %s20, 0
      %p62 = por %p60, %p61
      %p63 = scmp.ne.s32.totalorder %s49, %s50
      %p64 = scmp.eq.s32.totalorder %s21, 3
      %p65 = por %p63, %p64
      %p67 = scmp.ne.s32.totalorder %s50, %s66
      %p68 = scmp.eq.s32.totalorder %s21, 0
      %p69 = por %p67, %p68
      %s70 = ssub.s32 %s22, %s41
      %p71 = scmp.eq.s32.totalorder %s70, 0
      %s73 = sadd.s32 %s72, 1
      %s74 = scalar_select %p71, %s72, %s73
      %p77 = pneg %p71
      %p78 = scmp.eq.s32.totalorder %s15, 3
      %p79 = por %p77, %p78
      %p80 = scmp.ne.s32.totalorder %s72, %s75
      %p81 = scmp.eq.s32.totalorder %s15, 0
      %p82 = por %p80, %p81
      %p83 = scmp.ne.s32.totalorder %s72, %s75
      %p84 = scmp.eq.s32.totalorder %s20, 3
      %p85 = por %p83, %p84
      %p86 = scmp.ne.s32.totalorder %s75, %s76
      %p87 = scmp.eq.s32.totalorder %s20, 0
      %p88 = por %p86, %p87
      %p89 = scmp.ne.s32.totalorder %s75, %s76
      %p90 = scmp.eq.s32.totalorder %s21, 3
      %p91 = por %p89, %p90
      %p93 = scmp.ne.s32.totalorder %s76, %s92
      %p94 = scmp.eq.s32.totalorder %s21, 0
      %p95 = por %p93, %p94
      %s96 = ssub.s32 %s22, %s41
      %p97 = scmp.eq.s32.totalorder %s96, 0
      %s99 = sadd.s32 %s98, 1
      %s100 = scalar_select %p97, %s98, %s99
      %p103 = pneg %p97
      %p104 = scmp.eq.s32.totalorder %s15, 3
      %p105 = por %p103, %p104
      %p106 = scmp.ne.s32.totalorder %s98, %s101
      %p107 = scmp.eq.s32.totalorder %s15, 0
      %p108 = por %p106, %p107
      %p109 = scmp.ne.s32.totalorder %s98, %s101
      %p110 = scmp.eq.s32.totalorder %s20, 3
      %p111 = por %p109, %p110
      %p112 = scmp.ne.s32.totalorder %s101, %s102
      %p113 = scmp.eq.s32.totalorder %s20, 0
      %p114 = por %p112, %p113
      %p115 = scmp.ne.s32.totalorder %s101, %s102
      %p116 = scmp.eq.s32.totalorder %s21, 3
      %p117 = por %p115, %p116
      %p119 = scmp.ne.s32.totalorder %s102, %s118
      %p120 = scmp.eq.s32.totalorder %s21, 0
      %p121 = por %p119, %p120
      %s122 = ssub.s32 %s23, %s37
      %s123 = ssub.s32 %s22, %s41
      %s124 = sor.u32 %s122, %s123
      %p125 = scmp.eq.s32.totalorder %s124, 0
      %s127 = sadd.s32 %s126, 1
      %s128 = scalar_select %p125, %s126, %s127
      %p131 = pneg %p125
      %p132 = scmp.eq.s32.totalorder %s15, 3
      %p133 = por %p131, %p132
      %p134 = scmp.ne.s32.totalorder %s126, %s129
      %p135 = scmp.eq.s32.totalorder %s15, 0
      %p136 = por %p134, %p135
      %p137 = scmp.ne.s32.totalorder %s126, %s129
      %p138 = scmp.eq.s32.totalorder %s20, 3
      %p139 = por %p137, %p138
      %p140 = scmp.ne.s32.totalorder %s129, %s130
      %p141 = scmp.eq.s32.totalorder %s20, 0
      %p142 = por %p140, %p141
      %p143 = scmp.ne.s32.totalorder %s129, %s130
      %p144 = scmp.eq.s32.totalorder %s21, 3
      %p145 = por %p143, %p144
      %p147 = scmp.ne.s32.totalorder %s130, %s146
      %p148 = scmp.eq.s32.totalorder %s21, 0
      %p149 = por %p147, %p148
      %s150 = ssub.s32 %s24, %s33
      %s151 = ssub.s32 %s23, %s37
      %s152 = sor.u32 %s150, %s151
      %s153 = ssub.s32 %s22, %s41
      %s154 = sor.u32 %s152, %s153
      %p155 = scmp.eq.s32.totalorder %s154, 0
      %s157 = sadd.s32 %s156, 1
      %s158 = scalar_select %p155, %s156, %s157
      %p161 = pneg %p155
      %p162 = scmp.eq.s32.totalorder %s15, 3
      %p163 = por %p161, %p162
      %p164 = scmp.ne.s32.totalorder %s156, %s159
      %p165 = scmp.eq.s32.totalorder %s15, 0
      %p166 = por %p164, %p165
      %p167 = scmp.ne.s32.totalorder %s156, %s159
      %p168 = scmp.eq.s32.totalorder %s20, 3
      %p169 = por %p167, %p168
      %p170 = scmp.ne.s32.totalorder %s159, %s160
      %p171 = scmp.eq.s32.totalorder %s20, 0
      %p172 = por %p170, %p171
      %p173 = scmp.ne.s32.totalorder %s159, %s160
      %p174 = scmp.eq.s32.totalorder %s21, 3
      %p175 = por %p173, %p174
      %p177 = scmp.ne.s32.totalorder %s160, %s176
      %p178 = scmp.eq.s32.totalorder %s21, 0
      %p179 = por %p177, %p178
      %s180 = ssub.s32 %s23, %s37
      %s181 = ssub.s32 %s22, %s41
      %s182 = sor.u32 %s180, %s181
      %p183 = scmp.eq.s32.totalorder %s182, 0
      %s185 = sadd.s32 %s184, 1
      %s186 = scalar_select %p183, %s184, %s185
      %p189 = pneg %p183
      %p190 = scmp.eq.s32.totalorder %s15, 3
      %p191 = por %p189, %p190
      %p192 = scmp.ne.s32.totalorder %s184, %s187
      %p193 = scmp.eq.s32.totalorder %s15, 0
      %p194 = por %p192, %p193
      %p195 = scmp.ne.s32.totalorder %s184, %s187
      %p196 = scmp.eq.s32.totalorder %s20, 3
      %p197 = por %p195, %p196
      %p198 = scmp.ne.s32.totalorder %s187, %s188
      %p199 = scmp.eq.s32.totalorder %s20, 0
      %p200 = por %p198, %p199
      %p201 = scmp.ne.s32.totalorder %s187, %s188
      %p202 = scmp.eq.s32.totalorder %s21, 3
      %p203 = por %p201, %p202
      %p205 = scmp.ne.s32.totalorder %s188, %s204
      %p206 = scmp.eq.s32.totalorder %s21, 0
      %p207 = por %p205, %p206
      %p208 = scmp.le.s32.totalorder 1, %s15
      %p209 = scmp.lt.s32.totalorder %s15, 5
      %p210 = pnand %p208, %p209
      %p211 = pneg %p210
      // Predicated region
      $region9: #{lif_rollout.1} parent=5 // pred_check
        _
      $region10: #{lif_rollout.1} parent=5 // pred_check_branch
        %213 = sbr.rel (%p210) target = $region12
      $region11: #{lif_rollout.1} parent=5 // pred_region
        %s214 = ssub.s32 %s15, 1
        // Predicated region
        $region13: #{lif_rollout.1} parent=11 // pred_check
          %p215 = pneg %p88
        $region14: #{lif_rollout.1} parent=11 // pred_check_branch
          %217 = sbr.rel (%p215) target = $region16
        $region15: #{lif_rollout.1} parent=11 // pred_region
          %p218 = scmp.lt.s32.totalorder %s25, 0
          %s219 = scalar_select %p218, %s25, 0
          %s220 = smul.addr %s219, 4
          %s221 = scalar_lea.vmem %s1, %s220
        $region16: #{lif_rollout.1} parent=11 // pred_fallthru
          _
        // Predicated region
        $region17: #{lif_rollout.1} parent=11 // pred_check
          %p222 = pneg %p114
        $region18: #{lif_rollout.1} parent=11 // pred_check_branch
          %224 = sbr.rel (%p222) target = $region20
        $region19: #{lif_rollout.1} parent=11 // pred_region
          %p225 = scmp.lt.s32.totalorder %s25, 0
          %s226 = scalar_select %p225, %s25, 0
          %s227 = smul.addr %s226, 8
          %s228 = scalar_lea.vmem %s2, %s227
        $region20: #{lif_rollout.1} parent=11 // pred_fallthru
          _
        // Predicated region
        $region21: #{lif_rollout.1} parent=11 // pred_check
          %p229 = pneg %p142
        $region22: #{lif_rollout.1} parent=11 // pred_check_branch
          %231 = sbr.rel (%p229) target = $region24
        $region23: #{lif_rollout.1} parent=11 // pred_region
          %p232 = scmp.lt.s32.totalorder %s26, 0
          %s233 = scalar_select %p232, %s26, 0
          %p234 = scmp.lt.s32.totalorder %s25, 0
          %s235 = scalar_select %p234, %s25, 0
          %s236 = sadd.s32 %s235, %s233
          %s237 = smul.addr %s236, 8
          %s238 = scalar_lea.vmem %s3, %s237
        $region24: #{lif_rollout.1} parent=11 // pred_fallthru
          _
      $region12: #{lif_rollout.1} parent=5 // pred_fallthru
        _
      %p239 = scmp.lt.s32.totalorder %s15, 4
      // Predicated region
      $region25: #{lif_rollout.1} parent=5 // pred_check
        %p240 = pneg %p239
      $region26: #{lif_rollout.1} parent=5 // pred_check_branch
        %242 = sbr.rel (%p240) target = $region28
      $region27: #{lif_rollout.1} parent=5 // pred_region
        // Predicated region
        $region29: #{lif_rollout.1} parent=27 // pred_check
          %p243 = pneg %p56
        $region30: #{lif_rollout.1} parent=27 // pred_check_branch
          %245 = sbr.rel (%p243) target = $region32
        $region31: #{lif_rollout.1} parent=27 // pred_region
          %p246 = scmp.lt.s32.totalorder %s24, 3
          %s247 = scalar_select %p246, %s24, 3
          %p248 = scmp.lt.s32.totalorder %s23, 0
          %s249 = scalar_select %p248, %s23, 0
          %s250 = sadd.s32 %s249, %s247
          %s251 = smul.addr %s250, 4
          %s252 = scalar_lea.vmem %s0, %s251
        $region32: #{lif_rollout.1} parent=27 // pred_fallthru
          _
      $region28: #{lif_rollout.1} parent=5 // pred_fallthru
        _
      %p253 = scmp.le.s32.totalorder 1, %s15
      %p254 = scmp.lt.s32.totalorder %s15, 5
      %p255 = pnand %p253, %p254
      %p256 = pneg %p255
      // Predicated region
      $region33: #{lif_rollout.1} parent=5 // pred_check
        _
      $region34: #{lif_rollout.1} parent=5 // pred_check_branch
        %258 = sbr.rel (%p255) target = $region36
      $region35: #{lif_rollout.1} parent=5 // pred_region
        %s259 = ssub.s32 %s15, 1
        %p260 = scmp.lt.s32.totalorder %s27, 3
        %s261 = scalar_select %p260, %s27, 3
        %p262 = scmp.lt.s32.totalorder %s26, 0
        %s263 = scalar_select %p262, %s26, 0
        %s264 = sadd.s32 %s263, %s261
        %s265 = smul.addr %s264, 4
        %s266 = scalar_lea.vmem %s0, %s265
        %p267 = pneg %p62
        %p268 = pneg %p59
        %p269 = scmp.lt.s32.totalorder %s25, 0
        %s270 = scalar_select %p269, %s25, 0
        %s271 = smul.addr %s270, 4
        %s272 = scalar_lea.vmem %s1, %s271
        %p273 = pneg %p88
        %p274 = pneg %p85
        %p275 = scmp.lt.s32.totalorder %s25, 0
        %s276 = scalar_select %p275, %s25, 0
        %s277 = smul.addr %s276, 8
        %s278 = scalar_lea.vmem %s2, %s277
        %p279 = pneg %p114
        %p280 = pneg %p111
        %p281 = scmp.lt.s32.totalorder %s26, 0
        %s282 = scalar_select %p281, %s26, 0
        %p283 = scmp.lt.s32.totalorder %s25, 0
        %s284 = scalar_select %p283, %s25, 0
        %s285 = sadd.s32 %s284, %s282
        %s286 = smul.addr %s285, 8
        %s287 = scalar_lea.vmem %s3, %s286
        %p288 = pneg %p142
        %p289 = pneg %p139
        %p290 = pneg %p172
        %p291 = pneg %p169
        %s292 = sand.u32 %s159, 1
        %s293 = scalar_lea.sflag [#allocation4], %s292
        %s294 = sand.u32 %s159, 1
        %s295 = smul.addr %s294, 4
        %s296 = scalar_lea.vmem [#allocation3], %s295
        %p297 = pneg %p200
        %p298 = pneg %p197
        %p299 = scmp.lt.s32.totalorder %s26, 0
        %s300 = scalar_select %p299, %s26, 0
        %p301 = scmp.lt.s32.totalorder %s25, 0
        %s302 = scalar_select %p301, %s25, 0
        %s303 = sadd.s32 %s302, %s300
        %s304 = smul.addr %s303, 8
        %s305 = scalar_lea.vmem %s5, %s304
        %p306 = scmp.lt.s32.totalorder %s27, 3
        %s307 = scalar_select %p306, %s27, 3
        %p308 = scmp.lt.s32.totalorder %s26, 0
        %s309 = scalar_select %p308, %s26, 0
        %s310 = sadd.s32 %s309, %s307
        %s311 = smul.addr %s310, 4
        %s312 = scalar_lea.vmem %s0, %s311
        %p313 = scmp.lt.s32.totalorder %s25, 0
        %s314 = scalar_select %p313, %s25, 0
        %s315 = smul.addr %s314, 4
        %s316 = scalar_lea.vmem %s1, %s315
        %p317 = scmp.lt.s32.totalorder %s25, 0
        %s318 = scalar_select %p317, %s25, 0
        %s319 = smul.addr %s318, 8
        %s320 = scalar_lea.vmem %s2, %s319
        %p321 = scmp.lt.s32.totalorder %s26, 0
        %s322 = scalar_select %p321, %s26, 0
        %p323 = scmp.lt.s32.totalorder %s25, 0
        %s324 = scalar_select %p323, %s25, 0
        %s325 = sadd.s32 %s324, %s322
        %s326 = smul.addr %s325, 8
        %s327 = scalar_lea.vmem %s3, %s326
        %p328 = scmp.lt.s32.totalorder %s26, 0
        %s329 = scalar_select %p328, %s26, 0
        %p330 = scmp.lt.s32.totalorder %s25, 0
        %s331 = scalar_select %p330, %s25, 0
        %s332 = sadd.s32 %s331, %s329
        %s333 = smul.addr %s332, 8
        %s334 = scalar_lea.vmem %s5, %s333
        %p335 = scmp.eq.s32.totalorder %s27, 0
        // Predicated region
        $region37: #{lif_rollout.1} parent=35 // pred_check
          %p336 = pneg %p335
        $region38: #{lif_rollout.1} parent=35 // pred_check_branch
          %338 = sbr.rel (%p336) target = $region40
        $region39: #{lif_rollout.1} parent=35 // pred_region
          %v339 = vld [vmem:[%s327] sm:$0xff]
          %340 = vst [vmem:[#allocation2] sm:$0xff] %v339
        $region40: #{lif_rollout.1} parent=35 // pred_fallthru
          _
        %v341 = vld [vmem:[%s312] sm:$0xf]
        %v342 = vld [vmem:[%s316] sm:$0xf]
        %v343 = vld [vmem:[%s316 + $0x4] sm:$0xf]
        %v344 = vld [vmem:[%s316 + $0x8] sm:$0xf]
        %v345 = vld [vmem:[%s316 + $0xc] sm:$0xf]
        %v346 = vld [vmem:[%s316 + $0x10] sm:$0xf]
        %v347 = vld [vmem:[%s316 + $0x14] sm:$0xf]
        %v348 = vld [vmem:[%s316 + $0x18] sm:$0xf]
        %v349 = vld [vmem:[%s316 + $0x1c] sm:$0xf]
        %v350 = vld [vmem:[%s316 + $0x20] sm:$0xf]
        %v351 = vld [vmem:[%s316 + $0x24] sm:$0xf]
        %v352 = vld [vmem:[%s316 + $0x28] sm:$0xf]
        %v353 = vld [vmem:[%s316 + $0x2c] sm:$0xf]
        %v354 = vld [vmem:[%s316 + $0x30] sm:$0xf]
        %v355 = vld [vmem:[%s316 + $0x34] sm:$0xf]
        %v356 = vld [vmem:[%s316 + $0x38] sm:$0xf]
        %v357 = vld [vmem:[%s316 + $0x3c] sm:$0xf]
        %v374 = vunpack.c.l.b16 %v342
        %v375 = vunpack.c.l.b16 %v343
        %v376 = vunpack.c.l.b16 %v344
        %v377 = vunpack.c.l.b16 %v345
        %v378 = vunpack.c.l.b16 %v346
        %v379 = vunpack.c.l.b16 %v347
        %v380 = vunpack.c.l.b16 %v348
        %v381 = vunpack.c.l.b16 %v349
        %v382 = vunpack.c.l.b16 %v350
        %v383 = vunpack.c.l.b16 %v351
        %v384 = vunpack.c.l.b16 %v352
        %v385 = vunpack.c.l.b16 %v353
        %v386 = vunpack.c.l.b16 %v354
        %v387 = vunpack.c.l.b16 %v355
        %v388 = vunpack.c.l.b16 %v356
        %v389 = vunpack.c.l.b16 %v357
        %v390 = vpack.c.b16 %v375, %v374
        %v391 = vpack.c.b16 %v377, %v376
        %v392 = vpack.c.b16 %v379, %v378
        %v393 = vpack.c.b16 %v381, %v380
        %v394 = vpack.c.b16 %v383, %v382
        %v395 = vpack.c.b16 %v385, %v384
        %v396 = vpack.c.b16 %v387, %v386
        %v397 = vpack.c.b16 %v389, %v388
        %406 = vmatpush.bf16.msra.mxu0 %v397
        %407 = vmatpush.bf16.msra.mxu0 %v396
        %408 = vmatpush.bf16.msra.mxu0 %v395
        %409 = vmatpush.bf16.msra.mxu0 %v394
        %410 = vmatpush.bf16.msra.mxu0 %v393
        %411 = vmatpush.bf16.msra.mxu0 %v392
        %412 = vmatpush.bf16.msra.mxu0 %v391
        %413 = vmatpush.bf16.msra.mxu0 %v390
        %414 = vmatmul.bf16.gmra.mxu0 %v341
        %v415 = vpop.f32.mrf.mxu0
        %v416 = vadd.f32 0.0, %v415
        %v417 = vpop.f32.mrf.mxu0
        %418 = vdwg.mxu0
        %v419 = vld [vmem:[%s320] sm:$0x1]
        %v420 = vld [vmem:[%s320 + $0x1] sm:$0x1]
        %v421 = vld [vmem:[%s320 + $0x2] sm:$0x1]
        %v422 = vld [vmem:[#allocation2] sm:$0xff]
        %v423 = vperm.slane %v420, 0
        %v424 = vmul.f32 %v422, %v423
        %v425 = vadd.f32 %v424, %v416
        %v426 = vperm.slane %v419, 0
        %v427 = vadd.f32 %v425, %v426
        %v428 = vperm.slane %v421, 0
        %v429 = vsub.f32 %v427, %v428
        %v430 = vmul.f32 %v429, 5.0
        %v431 = vxor.u32 %v430, 2147483648
        %v432 = vmul.f32 %v431, 1.442695
        %v433 = vpow.pop %v432
        %v434 = vadd.f32 %v433, 1.0
        %v435 = vrcp.pop %v434
        %v436 = vmul.f32 %v434, %v435
        %v437 = vsub.f32 1.0, %v436
        %v438 = vmul.f32 %v435, %v437
        %v439 = vadd.f32 %v435, %v438
        %vm440 = vweird.f32 %v434
        %vm441 = vweird.f32 %v435
        %vm442 = vmor %vm440, %vm441
        %v443 = vsel %vm442, %v435, %v439
        %v444 = vand.u32 2147483647, %v434
        %vm445 = vcmp.eq.f32.partialorder %v444, 8.507059e+37
        %v446 = vand.u32 %v434, 2147483648
        %v447 = vor.u32 1.1754944e-38, %v446
        %v448 = vsel %vm445, %v447, %v443
        %v449 = vmul.f32 1.0, %v448
        %v450 = vpack.c.bf16 %v449, %v449
        %451 = vst [vmem:[%s296] sm:$0xf] %v450
        %v452 = vsub.f32 1.0, %v449
        %v453 = vmul.f32 %v427, %v452
        %454 = vst [vmem:[#allocation2] sm:$0xff] %v453
        %p455 = scmp.eq.s32.totalorder %s27, 3
        // Predicated region
        $region41: #{lif_rollout.1} parent=35 // pred_check
          %p456 = pneg %p455
        $region42: #{lif_rollout.1} parent=35 // pred_check_branch
          %458 = sbr.rel (%p456) target = $region44
        $region43: #{lif_rollout.1} parent=35 // pred_region
          %v459 = vld [vmem:[#allocation2] sm:$0xff]
          %460 = vst [vmem:[%s334] sm:$0xff] %v459
        $region44: #{lif_rollout.1} parent=35 // pred_fallthru
          _
        %s461 = sand.u32 %s159, 1
        %s462 = scalar_lea.sflag [#allocation4], %s461
        %s463 = sand.u32 %s159, 1
        %s464 = smul.addr %s463, 4
        %s465 = scalar_lea.vmem [#allocation3], %s464
        %p466 = scmp.lt.s32.totalorder %s26, 0
        %s467 = scalar_select %p466, %s26, 0
        %p468 = scmp.lt.s32.totalorder %s25, 0
        %s469 = scalar_select %p468, %s25, 0
        %s470 = sadd.s32 %s469, %s467
        %s471 = smul.addr %s470, 8
        %s472 = scalar_lea.vmem %s5, %s471
        // Predicated region
        $region45: #{lif_rollout.1} parent=35 // pred_check
          %p473 = pneg %p169
        $region46: #{lif_rollout.1} parent=35 // pred_check_branch
          %475 = sbr.rel (%p473) target = $region48
        $region47: #{lif_rollout.1} parent=35 // pred_region
          %477 = vsyncadd %s462, 0
          %s478 = sadd.s32 %s25, %s26
          %s479 = sadd.s32 %s478, %s27
          %s480 = smul.addr %s479, 4
          %s481 = scalar_lea.hbm %s4, %s480
          %s483 = sshll.u32 %s465, 4
          %s484 = int_to_ptr.vmem [resolvable:$true] %s483
          %s485 = sshll.u32 %s481, 4
          %s486 = int_to_ptr.hbm [resolvable:$true] %s485
          %488 = dma.vmem_to_hbm [thread:$0]  %s484, 64, %s486, %s462
        $region48: #{lif_rollout.1} parent=35 // pred_fallthru
          _
        // Predicated region
        $region49: #{lif_rollout.1} parent=35 // pred_check
          %p489 = pneg %p197
        $region50: #{lif_rollout.1} parent=35 // pred_check_branch
          %491 = sbr.rel (%p489) target = $region52
        $region51: #{lif_rollout.1} parent=35 // pred_region
          _
        $region52: #{lif_rollout.1} parent=35 // pred_fallthru
          _
        // Predicated region
        $region53: #{lif_rollout.1} parent=35 // pred_check
          %p492 = pneg %p197
        $region54: #{lif_rollout.1} parent=35 // pred_check_branch
          %494 = sbr.rel (%p492) target = $region56
        $region55: #{lif_rollout.1} parent=35 // pred_region
          %p495 = scmp.lt.s32.totalorder %s26, 0
          %s496 = scalar_select %p495, %s26, 0
          %p497 = scmp.lt.s32.totalorder %s25, 0
          %s498 = scalar_select %p497, %s25, 0
          %s499 = sadd.s32 %s498, %s496
          %s500 = smul.addr %s499, 8
          %s501 = scalar_lea.vmem %s5, %s500
        $region56: #{lif_rollout.1} parent=35 // pred_fallthru
          _
      $region36: #{lif_rollout.1} parent=5 // pred_fallthru
        _
      %p502 = scmp.le.s32.totalorder 2, %s15
      // Predicated region
      $region57: #{lif_rollout.1} parent=5 // pred_check
        %p503 = pneg %p502
      $region58: #{lif_rollout.1} parent=5 // pred_check_branch
        %505 = sbr.rel (%p503) target = $region60
      $region59: #{lif_rollout.1} parent=5 // pred_region
        %s506 = ssub.s32 %s15, 2
        // Predicated region
        $region61: #{lif_rollout.1} parent=59 // pred_check
          %p507 = pneg %p175
        $region62: #{lif_rollout.1} parent=59 // pred_check_branch
          %509 = sbr.rel (%p507) target = $region64
        $region63: #{lif_rollout.1} parent=59 // pred_region
          %s510 = sand.u32 %s160, 1
          %s511 = scalar_lea.sflag [#allocation4], %s510
          %s512 = sand.u32 %s160, 1
          %s513 = smul.addr %s512, 4
          %s514 = scalar_lea.vmem [#allocation3], %s513
          %516 = dma.done %s511, 64
        $region64: #{lif_rollout.1} parent=59 // pred_fallthru
          _
      $region60: #{lif_rollout.1} parent=5 // pred_fallthru
        _
    $region6: #{lif_rollout.1} parent=1 // loop_footer
      %s19 = sadd.s32 1, %s15
    $region7: #{lif_rollout.1} parent=1 // loop_footer_branch
      %14 = sbr.rel target = $region3
    $region8: #{lif_rollout.1} parent=1 // loop_exit
      _
    %517 = vsyncpa [#allocation4], 1
    %s518 = scalar_lea.sflag [#allocation4], 1
    %519 = vsyncpa %s518, 1

</llo_original>
